<compile_context>
chip_gen: v7x
topology: tpu7x:2x2x1
jax: 0.10.0
libtpu: 0.0.40
codegen_flags: <defaults>
</compile_context>

<pallas_src>
import jax
import jax.numpy as jnp
from jax import lax
from jax.experimental import pallas as pl
from jax.experimental.pallas import tpu as pltpu


def _attention_kernel(user_ref, item_ref, wq_ref, bq_ref, wkv_ref, bkv_ref, out_ref):
    """Single grid step = whole batch.

    user_ref : (B, Lq, D)    item_ref : (B, Lk, D)
    wq_ref   : (D, D)   (in, out) layout     bq_ref  : (1, D)
    wkv_ref  : (D, 2D)  [Wk.T | Wv.T]        bkv_ref : (1, 2D)  [bk | bv]
    out_ref  : (B, Lq, D)
    """
    B, Lq, D = user_ref.shape
    Lk = item_ref.shape[1]

    # Collapse the batch into the sublane (M) dimension for the projections.
    # (B, L, D) -> (B*L, D) is tile-aligned here (L == 8 sublanes) => free.
    u2 = user_ref[...].reshape(B * Lq, D)
    it2 = item_ref[...].reshape(B * Lk, D)

    # Q projection and fused K/V projection: plain x @ W on the MXU
    # (weights already (in, out); no in-kernel transpose).
    q2 = jnp.dot(u2, wq_ref[...], preferred_element_type=jnp.float32) + bq_ref[...]
    kv2 = jnp.dot(it2, wkv_ref[...], preferred_element_type=jnp.float32) + bkv_ref[...]

    q = q2.reshape(B, Lq, D)
    k = kv2[:, :D].reshape(B, Lk, D)
    v = kv2[:, D:].reshape(B, Lk, D)

    # Scaled dot-product scores, contracting the last dims directly
    # (no explicit k transpose): (B, Lq, Lk)
    scale = 1.0 / jnp.sqrt(jnp.float32(D))
    scores = lax.dot_general(
        q, k,
        dimension_numbers=(((2,), (2,)), ((0,), (0,))),
        preferred_element_type=jnp.float32) * scale

    # Numerically stable softmax over the last dim; reciprocal on the EUP.
    m = jnp.max(scores, axis=-1, keepdims=True)
    e = jnp.exp(scores - m)
    denom = jnp.sum(e, axis=-1, keepdims=True)
    attn = e * pl.reciprocal(denom, approx=True)

    # TODO(synk): the PyTorch module `print`s attention_weights / value
    # (side effect only, does not affect the returned tensor) — omitted here.

    # Attended output: (B, Lq, Lk) x (B, Lk, D) -> (B, Lq, D)
    out_ref[...] = lax.dot_general(
        attn, v,
        dimension_numbers=(((2,), (1,)), ((0,), (0,))),
        preferred_element_type=jnp.float32)


def attention_layer(user_embed, item_embed, wq, bq, wk, bk, wv, bv):
    B, Lq, D = user_embed.shape
    _, Lk, _ = item_embed.shape

    # Hoisted, one-time weight preparation (done by XLA outside the kernel):
    #   (out, in) -> (in, out), and fuse the K/V weights & biases.
    wq_t = wq.T                                       # (D, D)
    wkv_t = jnp.concatenate([wk.T, wv.T], axis=1)     # (D, 2D)
    bkv = jnp.concatenate([bk, bv], axis=1)           # (1, 2D)

    flops = (2 * B * Lq * D * D            # Q projection
             + 2 * B * Lk * D * (2 * D)    # fused K/V projection
             + 2 * B * Lq * Lk * D         # Q K^T
             + 2 * B * Lq * Lk * D)        # attn @ V
    transcendentals = B * Lq * Lk + B * Lq  # exp + reciprocal
    bytes_accessed = 4 * (user_embed.size + item_embed.size + wq_t.size
                          + bq.size + wkv_t.size + bkv.size + B * Lq * D)

    def full(shape):
        return pl.BlockSpec(shape, lambda i, s=shape: (0,) * len(s))

    return pl.pallas_call(
        _attention_kernel,
        out_shape=jax.ShapeDtypeStruct((B, Lq, D), jnp.float32),
        grid=(1,),
        in_specs=[
            full((B, Lq, D)),      # user_embed
            full((B, Lk, D)),      # item_embed
            full((D, D)),          # Wq (in, out)
            full((1, D)),          # bq
            full((D, 2 * D)),      # [Wk | Wv] (in, out)
            full((1, 2 * D)),      # [bk | bv]
        ],
        out_specs=full((B, Lq, D)),
        compiler_params=pltpu.CompilerParams(
            dimension_semantics=("arbitrary",)),
        cost_estimate=pl.CostEstimate(
            flops=flops,
            transcendentals=transcendentals,
            bytes_accessed=bytes_accessed),
    )(user_embed, item_embed, wq_t, bq, wkv_t, bkv)


def _reference(user_embed, item_embed, wq, bq, wk, bk, wv, bv):
    q = user_embed @ wq.T + bq
    k = item_embed @ wk.T + bk
    v = item_embed @ wv.T + bv
    d = user_embed.shape[-1]
    scores = jnp.einsum('bqd,bkd->bqk', q, k) / jnp.sqrt(jnp.float32(d))
    attn = jax.nn.softmax(scores, axis=-1)
    return jnp.einsum('bqk,bkd->bqd', attn, v)


if __name__ == "__main__":
    B, Lq, Lk, D = 2, 8, 8, 32

    key = jax.random.PRNGKey(0)
    ks = jax.random.split(key, 8)

    user_embed = jax.random.normal(ks[0], (B, Lq, D), dtype=jnp.float32)
    item_embed = jax.random.normal(ks[1], (B, Lk, D), dtype=jnp.float32)

    # Deterministic nn.Linear-style init: uniform(-1/sqrt(D), 1/sqrt(D)).
    bound = 1.0 / jnp.sqrt(jnp.float32(D))
    wq = jax.random.uniform(ks[2], (D, D), jnp.float32, -bound, bound)
    bq = jax.random.uniform(ks[3], (1, D), jnp.float32, -bound, bound)
    wk = jax.random.uniform(ks[4], (D, D), jnp.float32, -bound, bound)
    bk = jax.random.uniform(ks[5], (1, D), jnp.float32, -bound, bound)
    wv = jax.random.uniform(ks[6], (D, D), jnp.float32, -bound, bound)
    bv = jax.random.uniform(ks[7], (1, D), jnp.float32, -bound, bound)

    out = attention_layer(user_embed, item_embed, wq, bq, wk, bk, wv, bv)
    out = jax.block_until_ready(out)

    ref = _reference(user_embed, item_embed, wq, bq, wk, bk, wv, bv)
    assert out.shape == (B, Lq, D)
    # approx=True reciprocal (EUP vrcp) adds ~2^-12 relative error on the
    # softmax denominator; tolerance relaxed accordingly.
    assert jnp.allclose(out, ref, atol=2e-3, rtol=2e-3), "mismatch vs reference"

    print("KERNEL_OK")
</pallas_src>

<mosaic_0001>
module attributes {stable_mosaic.version = 11 : i64} {
  func.func @_attention_kernel(%arg0: i32, %arg1: memref<2x8x32xf32, #tpu.memory_space<vmem>>, %arg2: memref<2x8x32xf32, #tpu.memory_space<vmem>>, %arg3: memref<32x32xf32, #tpu.memory_space<vmem>>, %arg4: memref<1x32xf32, #tpu.memory_space<vmem>>, %arg5: memref<32x64xf32, #tpu.memory_space<vmem>>, %arg6: memref<1x64xf32, #tpu.memory_space<vmem>>, %arg7: memref<2x8x32xf32, #tpu.memory_space<vmem>>) attributes {dimension_semantics = [#tpu.dimension_semantics<arbitrary>], iteration_bounds = array<i64: 1>, scalar_prefetch = 0 : i64, scratch_operands = 0 : i64, tpu.core_type = #tpu.core_type<tc>, window_params = [{pipeline_mode = #tpu.pipeline_mode<synchronous>, transform_indices = @transform_0, window_bounds = array<i64: 2, 8, 32>}, {pipeline_mode = #tpu.pipeline_mode<synchronous>, transform_indices = @transform_1, window_bounds = array<i64: 2, 8, 32>}, {pipeline_mode = #tpu.pipeline_mode<synchronous>, transform_indices = @transform_2, window_bounds = array<i64: 32, 32>}, {pipeline_mode = #tpu.pipeline_mode<synchronous>, transform_indices = @transform_3, window_bounds = array<i64: 1, 32>}, {pipeline_mode = #tpu.pipeline_mode<synchronous>, transform_indices = @transform_4, window_bounds = array<i64: 32, 64>}, {pipeline_mode = #tpu.pipeline_mode<synchronous>, transform_indices = @transform_5, window_bounds = array<i64: 1, 64>}, {pipeline_mode = #tpu.pipeline_mode<synchronous>, transform_indices = @transform_6, window_bounds = array<i64: 2, 8, 32>}]} {
    %c0 = arith.constant 0 : index
    %c0_0 = arith.constant 0 : index
    %c0_1 = arith.constant 0 : index
    %0 = vector.load %arg1[%c0, %c0_0, %c0_1] : memref<2x8x32xf32, #tpu.memory_space<vmem>>, vector<2x8x32xf32>
    %1 = vector.shape_cast %0 : vector<2x8x32xf32> to vector<16x32xf32>
    %c0_2 = arith.constant 0 : index
    %c0_3 = arith.constant 0 : index
    %c0_4 = arith.constant 0 : index
    %2 = vector.load %arg2[%c0_2, %c0_3, %c0_4] : memref<2x8x32xf32, #tpu.memory_space<vmem>>, vector<2x8x32xf32>
    %3 = vector.shape_cast %2 : vector<2x8x32xf32> to vector<16x32xf32>
    %c0_5 = arith.constant 0 : index
    %c0_6 = arith.constant 0 : index
    %4 = vector.load %arg3[%c0_5, %c0_6] : memref<32x32xf32, #tpu.memory_space<vmem>>, vector<32x32xf32>
    %cst = arith.constant dense<0.000000e+00> : vector<16x32xf32>
    %5 = tpu.matmul %1, %4, %cst {dimension_numbers = #tpu.dot_dimension_numbers<[1], [0], [0], [1], [0, 0, 1, 1], [], []>} : vector<16x32xf32>, vector<32x32xf32>, vector<16x32xf32> -> vector<16x32xf32>
    %c0_7 = arith.constant 0 : index
    %c0_8 = arith.constant 0 : index
    %6 = vector.load %arg4[%c0_7, %c0_8] : memref<1x32xf32, #tpu.memory_space<vmem>>, vector<1x32xf32>
    %7 = vector.broadcast %6 : vector<1x32xf32> to vector<16x32xf32>
    %8 = arith.addf %5, %7 : vector<16x32xf32>
    %c0_9 = arith.constant 0 : index
    %c0_10 = arith.constant 0 : index
    %9 = vector.load %arg5[%c0_9, %c0_10] : memref<32x64xf32, #tpu.memory_space<vmem>>, vector<32x64xf32>
    %cst_11 = arith.constant dense<0.000000e+00> : vector<16x64xf32>
    %10 = tpu.matmul %3, %9, %cst_11 {dimension_numbers = #tpu.dot_dimension_numbers<[1], [0], [0], [1], [0, 0, 1, 1], [], []>} : vector<16x32xf32>, vector<32x64xf32>, vector<16x64xf32> -> vector<16x64xf32>
    %c0_12 = arith.constant 0 : index
    %c0_13 = arith.constant 0 : index
    %11 = vector.load %arg6[%c0_12, %c0_13] : memref<1x64xf32, #tpu.memory_space<vmem>>, vector<1x64xf32>
    %12 = vector.broadcast %11 : vector<1x64xf32> to vector<16x64xf32>
    %13 = arith.addf %10, %12 : vector<16x64xf32>
    %14 = vector.shape_cast %8 : vector<16x32xf32> to vector<2x8x32xf32>
    %15 = vector.extract_strided_slice %13 {offsets = [0, 0], sizes = [16, 32], strides = [1, 1]} : vector<16x64xf32> to vector<16x32xf32>
    %16 = vector.shape_cast %15 : vector<16x32xf32> to vector<2x8x32xf32>
    %17 = vector.extract_strided_slice %13 {offsets = [0, 32], sizes = [16, 32], strides = [1, 1]} : vector<16x64xf32> to vector<16x32xf32>
    %18 = vector.shape_cast %17 : vector<16x32xf32> to vector<2x8x32xf32>
    %cst_14 = arith.constant 3.200000e+01 : f32
    %19 = math.sqrt %cst_14 : f32
    %cst_15 = arith.constant 1.000000e+00 : f32
    %20 = arith.divf %cst_15, %19 : f32
    %cst_16 = arith.constant dense<0.000000e+00> : vector<2x8x8xf32>
    %21 = tpu.matmul %14, %16, %cst_16 {dimension_numbers = #tpu.dot_dimension_numbers<[2], [2], [1], [1], [0, 0, 0, 1, 1, 1], [0], [0]>} : vector<2x8x32xf32>, vector<2x8x32xf32>, vector<2x8x8xf32> -> vector<2x8x8xf32>
    %22 = vector.broadcast %20 : f32 to vector<2x8x8xf32>
    %23 = arith.mulf %21, %22 : vector<2x8x8xf32>
    %cst_17 = arith.constant dense<0xFF800000> : vector<2x8xf32>
    %24 = vector.multi_reduction <maximumf>, %23, %cst_17 [2] : vector<2x8x8xf32> to vector<2x8xf32>
    %25 = vector.shape_cast %24 : vector<2x8xf32> to vector<2x8x1xf32>
    %26 = vector.broadcast %25 : vector<2x8x1xf32> to vector<2x8x8xf32>
    %27 = arith.subf %23, %26 : vector<2x8x8xf32>
    %28 = math.exp %27 : vector<2x8x8xf32>
    %cst_18 = arith.constant dense<0.000000e+00> : vector<2x8xf32>
    %29 = vector.multi_reduction <add>, %28, %cst_18 [2] : vector<2x8x8xf32> to vector<2x8xf32>
    %30 = vector.shape_cast %29 : vector<2x8xf32> to vector<2x8x1xf32>
    %31 = tpu.reciprocal %30 {approx = true} : vector<2x8x1xf32> -> vector<2x8x1xf32>
    %32 = vector.broadcast %31 : vector<2x8x1xf32> to vector<2x8x8xf32>
    %33 = arith.mulf %28, %32 : vector<2x8x8xf32>
    %cst_19 = arith.constant dense<0.000000e+00> : vector<2x8x32xf32>
    %34 = tpu.matmul %33, %18, %cst_19 {dimension_numbers = #tpu.dot_dimension_numbers<[2], [1], [1], [2], [0, 0, 0, 1, 1, 2], [0], [0]>} : vector<2x8x8xf32>, vector<2x8x32xf32>, vector<2x8x32xf32> -> vector<2x8x32xf32>
    %c0_20 = arith.constant 0 : index
    %c0_21 = arith.constant 0 : index
    %c0_22 = arith.constant 0 : index
    %35 = vector.load %arg7[%c0_20, %c0_21, %c0_22] : memref<2x8x32xf32, #tpu.memory_space<vmem>>, vector<2x8x32xf32>
    tpu.vector_store %arg7[%c0_20, %c0_21, %c0_22], %34 {strides = array<i32>} : memref<2x8x32xf32, #tpu.memory_space<vmem>>, vector<2x8x32xf32>,
    return
  }
  func.func @transform_0(%arg0: i32) -> (i32, i32, i32) {
    %c0_i32 = arith.constant 0 : i32
    %c0_i32_0 = arith.constant 0 : i32
    %c0_i32_1 = arith.constant 0 : i32
    %c0_i32_2 = arith.constant 0 : i32
    return %c0_i32, %c0_i32_0, %c0_i32_1 : i32, i32, i32
  }
  func.func @transform_1(%arg0: i32) -> (i32, i32, i32) {
    %c0_i32 = arith.constant 0 : i32
    %c0_i32_0 = arith.constant 0 : i32
    %c0_i32_1 = arith.constant 0 : i32
    %c0_i32_2 = arith.constant 0 : i32
    return %c0_i32, %c0_i32_0, %c0_i32_1 : i32, i32, i32
  }
  func.func @transform_2(%arg0: i32) -> (i32, i32) {
    %c0_i32 = arith.constant 0 : i32
    %c0_i32_0 = arith.constant 0 : i32
    %c0_i32_1 = arith.constant 0 : i32
    return %c0_i32, %c0_i32_0 : i32, i32
  }
  func.func @transform_3(%arg0: i32) -> (i32, i32) {
    %c0_i32 = arith.constant 0 : i32
    %c0_i32_0 = arith.constant 0 : i32
    %c0_i32_1 = arith.constant 0 : i32
    return %c0_i32, %c0_i32_0 : i32, i32
  }
  func.func @transform_4(%arg0: i32) -> (i32, i32) {
    %c0_i32 = arith.constant 0 : i32
    %c0_i32_0 = arith.constant 0 : i32
    %c0_i32_1 = arith.constant 0 : i32
    return %c0_i32, %c0_i32_0 : i32, i32
  }
  func.func @transform_5(%arg0: i32) -> (i32, i32) {
    %c0_i32 = arith.constant 0 : i32
    %c0_i32_0 = arith.constant 0 : i32
    %c0_i32_1 = arith.constant 0 : i32
    return %c0_i32, %c0_i32_0 : i32, i32
  }
  func.func @transform_6(%arg0: i32) -> (i32, i32, i32) {
    %c0_i32 = arith.constant 0 : i32
    %c0_i32_0 = arith.constant 0 : i32
    %c0_i32_1 = arith.constant 0 : i32
    %c0_i32_2 = arith.constant 0 : i32
    return %c0_i32, %c0_i32_0, %c0_i32_1 : i32, i32, i32
  }
}

</mosaic_0001>

<llo_original>
// kernel: tpu_custom_call.1
$region0: #{tpu_custom_call.1}
  #allocation0 [shape = 'u32[]', space=smem, size = 0x4, offset = 0x4, fixed_abs, tag = 'smem constant byte address 0x4 - core index']
  #allocation1 [shape = 'u32[144,128]{1,0:T(1,128)}', space=vmem, size = 0x12000, scoped, tag = 'internal scratch']
  %s0 = inlined_call_operand.hbm [shape: f32[2,8,32], index: 0, kind: input, shape index: {}]
  %s1 = inlined_call_operand.hbm [shape: f32[2,8,32], index: 1, kind: input, shape index: {}]
  %s2 = inlined_call_operand.hbm [shape: f32[32,32], index: 2, kind: input, shape index: {}]
  %s3 = inlined_call_operand.vmem [shape: f32[1,32], index: 3, kind: input, shape index: {}]
  %s4 = inlined_call_operand.hbm [shape: f32[32,64], index: 4, kind: input, shape index: {}]
  %s5 = inlined_call_operand.vmem [shape: f32[1,64], index: 5, kind: input, shape index: {}]
  %s6 = inlined_call_operand.hbm [shape: f32[2,8,32], index: 6, kind: output, shape index: {}]
  %s7 = sld [smem:[#allocation0]]
  $region50: #{tpu_custom_call.1} parent=0
    _
  %s9 = ssub.s32 1, %s7
  %s10 = scalar_select 0, %s9, %s7
  $region1: #{tpu_custom_call.1} parent=0
    #allocation2 [shape = 'u8[8192]{0}', space=vmem, size = 0x2000, scoped, tag = 'input window, operand 0, single buffered']
    #allocation3 [shape = 's32[1]{0}', space=sflag, size = 0x4, scoped, tag = 'scoped memory for tpu_custom_call.1']
    #allocation4 [shape = 's32[1]{0}', space=sflag, size = 0x4, scoped, tag = 'scoped memory for tpu_custom_call.1']
    #allocation5 [shape = 'u8[8192]{0}', space=vmem, size = 0x2000, scoped, tag = 'input window, operand 1, single buffered']
    #allocation6 [shape = 's32[1]{0}', space=sflag, size = 0x4, scoped, tag = 'scoped memory for tpu_custom_call.1']
    #allocation7 [shape = 'u8[16384]{0}', space=vmem, size = 0x4000, scoped, tag = 'input window, operand 2, single buffered']
    #allocation8 [shape = 'u8[16384]{0}', space=vmem, size = 0x4000, scoped, tag = 'input window, operand 4, single buffered']
    #allocation9 [shape = 's32[1]{0}', space=sflag, size = 0x4, scoped, tag = 'scoped memory for tpu_custom_call.1']
    #allocation10 [shape = 'u8[8192]{0}', space=vmem, size = 0x2000, scoped, tag = 'output window, operand 0, single buffered']
    %11 = vsyncpa [#allocation3], 0
    %12 = vsyncpa [#allocation6], 0
    %13 = vsyncpa [#allocation9], 0
    %14 = vsyncpa [#allocation4], 0
    // Predicated region
    $region2: #{tpu_custom_call.1} parent=1 // pred_check
      _
    $region3: #{tpu_custom_call.1} parent=1 // pred_check_branch
      %16 = sbr.rel (0) target = $region5
    $region4: #{tpu_custom_call.1} parent=1 // pred_region
      %s18 = ssub.s32 256, 256
      %19 = vsyncadd [#allocation3], %s18
      %s20 = sshll.u32 [#allocation2], 4
      %s21 = int_to_ptr.vmem [resolvable:$true] %s20
      %26 = dma.hbm_to_vmem [thread:$0]  %s0, 256, %s21, [#allocation3], 128, 128, 8
    $region5: #{tpu_custom_call.1} parent=1 // pred_fallthru
      _
    // Predicated region
    $region6: #{tpu_custom_call.1} parent=1 // pred_check
      _
    $region7: #{tpu_custom_call.1} parent=1 // pred_check_branch
      %28 = sbr.rel (0) target = $region9
    $region8: #{tpu_custom_call.1} parent=1 // pred_region
      %s30 = ssub.s32 256, 256
      %31 = vsyncadd [#allocation6], %s30
      %s32 = sshll.u32 [#allocation5], 4
      %s33 = int_to_ptr.vmem [resolvable:$true] %s32
      %38 = dma.hbm_to_vmem [thread:$0]  %s1, 256, %s33, [#allocation6], 128, 128, 8
    $region9: #{tpu_custom_call.1} parent=1 // pred_fallthru
      _
    // Predicated region
    $region10: #{tpu_custom_call.1} parent=1 // pred_check
      _
    $region11: #{tpu_custom_call.1} parent=1 // pred_check_branch
      %40 = sbr.rel (0) target = $region13
    $region12: #{tpu_custom_call.1} parent=1 // pred_region
      %s42 = ssub.s32 512, 512
      %43 = vsyncadd [#allocation6], %s42
      %s44 = sshll.u32 [#allocation7], 4
      %s45 = int_to_ptr.vmem [resolvable:$true] %s44
      %50 = dma.hbm_to_vmem [thread:$0]  %s2, 512, %s45, [#allocation6], 128, 128, 8
    $region13: #{tpu_custom_call.1} parent=1 // pred_fallthru
      _
    // Predicated region
    $region14: #{tpu_custom_call.1} parent=1 // pred_check
      _
    $region15: #{tpu_custom_call.1} parent=1 // pred_check_branch
      %52 = sbr.rel (0) target = $region17
    $region16: #{tpu_custom_call.1} parent=1 // pred_region
      _
    $region17: #{tpu_custom_call.1} parent=1 // pred_fallthru
      _
    // Predicated region
    $region18: #{tpu_custom_call.1} parent=1 // pred_check
      _
    $region19: #{tpu_custom_call.1} parent=1 // pred_check_branch
      %54 = sbr.rel (0) target = $region21
    $region20: #{tpu_custom_call.1} parent=1 // pred_region
      %s56 = ssub.s32 512, 512
      %57 = vsyncadd [#allocation9], %s56
      %s58 = sshll.u32 [#allocation8], 4
      %s59 = int_to_ptr.vmem [resolvable:$true] %s58
      %64 = dma.hbm_to_vmem [thread:$0]  %s4, 512, %s59, [#allocation9], 128, 128, 8
    $region21: #{tpu_custom_call.1} parent=1 // pred_fallthru
      _
    // Predicated region
    $region22: #{tpu_custom_call.1} parent=1 // pred_check
      _
    $region23: #{tpu_custom_call.1} parent=1 // pred_check_branch
      %66 = sbr.rel (0) target = $region25
    $region24: #{tpu_custom_call.1} parent=1 // pred_region
      _
    $region25: #{tpu_custom_call.1} parent=1 // pred_fallthru
      _
    // Predicated region
    $region26: #{tpu_custom_call.1} parent=1 // pred_check
      _
    $region27: #{tpu_custom_call.1} parent=1 // pred_check_branch
      %68 = sbr.rel (0) target = $region29
    $region28: #{tpu_custom_call.1} parent=1 // pred_region
      %69 = dma.done [#allocation3], 256
    $region29: #{tpu_custom_call.1} parent=1 // pred_fallthru
      _
    // Predicated region
    $region30: #{tpu_custom_call.1} parent=1 // pred_check
      _
    $region31: #{tpu_custom_call.1} parent=1 // pred_check_branch
      %71 = sbr.rel (0) target = $region33
    $region32: #{tpu_custom_call.1} parent=1 // pred_region
      %72 = dma.done [#allocation6], 256
    $region33: #{tpu_custom_call.1} parent=1 // pred_fallthru
      _
    // Predicated region
    $region34: #{tpu_custom_call.1} parent=1 // pred_check
      _
    $region35: #{tpu_custom_call.1} parent=1 // pred_check_branch
      %74 = sbr.rel (0) target = $region37
    $region36: #{tpu_custom_call.1} parent=1 // pred_region
      %75 = dma.done [#allocation6], 512
    $region37: #{tpu_custom_call.1} parent=1 // pred_fallthru
      _
    // Predicated region
    $region38: #{tpu_custom_call.1} parent=1 // pred_check
      _
    $region39: #{tpu_custom_call.1} parent=1 // pred_check_branch
      %77 = sbr.rel (0) target = $region41
    $region40: #{tpu_custom_call.1} parent=1 // pred_region
      %78 = dma.done [#allocation9], 512
    $region41: #{tpu_custom_call.1} parent=1 // pred_fallthru
      _
    %v79 = vld [vmem:[#allocation2] sm:$0xff]
    %v80 = vld [vmem:[#allocation2 + $0x8] sm:$0xff]
    %v81 = vld [vmem:[#allocation5] sm:$0xff]
    %v82 = vld [vmem:[#allocation5 + $0x8] sm:$0xff]
    %v83 = vld [vmem:[#allocation7] sm:$0xff]
    %v84 = vld [vmem:[#allocation7 + $0x8] sm:$0xff]
    %v85 = vld [vmem:[#allocation7 + $0x10] sm:$0xff]
    %v86 = vld [vmem:[#allocation7 + $0x18] sm:$0xff]
    %v87 = vld [vmem:[%s3] sm:$0x1]
    %v89 = vlaneseq
    %v90 = vshrl.u32 %v89, 7
    %v91 = vsub.s32 0, %v90
    %v92 = vrot.slane %v87, %v91
    %vm94 = vcmask 261120
    %v96 = vsel %vm94, %v79, 0
    %v99 = vsel %vm94, %v80, 0
    %101 = vmatprep.subr.mxu0 0.0
    %102 = vmatpush1.msra.mxu0 %v83
    %103 = vmatprep.subr.mxu0 0.0
    %104 = vmatpush1.msra.mxu0 %v84
    %105 = vmatprep.subr.mxu0 0.0
    %106 = vmatpush1.msra.mxu0 %v85
    %107 = vmatprep.subr.mxu0 0.0
    %108 = vmatpush1.msra.mxu0 %v86
    %109 = vmatprep.subr.mxu0 0.0
    %110 = vmatpush1.msra.mxu0 0.0
    %111 = vmatprep.subr.mxu0 0.0
    %112 = vmatpush1.msra.mxu0 0.0
    %113 = vmatprep.subr.mxu0 0.0
    %114 = vmatpush1.msra.mxu0 0.0
    %115 = vmatprep.subr.mxu0 0.0
    %116 = vmatpush1.msra.mxu0 0.0
    %117 = vmatprep.subr.mxu0 0.0
    %118 = vmatpush1.msra.mxu0 0.0
    %119 = vmatprep.subr.mxu0 0.0
    %120 = vmatpush1.msra.mxu0 0.0
    %121 = vmatprep.subr.mxu0 0.0
    %122 = vmatpush1.msra.mxu0 0.0
    %123 = vmatprep.subr.mxu0 0.0
    %124 = vmatpush1.msra.mxu0 0.0
    %125 = vmatprep.subr.mxu0 0.0
    %126 = vmatpush1.msra.mxu0 0.0
    %127 = vmatprep.subr.mxu0 0.0
    %128 = vmatpush1.msra.mxu0 0.0
    %129 = vmatprep.subr.mxu0 0.0
    %130 = vmatpush1.msra.mxu0 0.0
    %131 = vmatprep.subr.mxu0 0.0
    %132 = vmatpush1.msra.mxu0 0.0
    %133 = vmatprep.subr.mxu0 0.0
    %134 = vmatpush1.msra.mxu0 0.0
    %135 = vmatprep.subr.mxu0 0.0
    %136 = vmatpush1.msra.mxu0 0.0
    %137 = vmatprep.subr.mxu0 0.0
    %138 = vmatpush1.msra.mxu0 0.0
    %139 = vmatprep.subr.mxu0 0.0
    %140 = vmatpush1.msra.mxu0 0.0
    %141 = vmatprep.subr.mxu0 0.0
    %142 = vmatpush1.msra.mxu0 0.0
    %143 = vmatprep.subr.mxu0 0.0
    %144 = vmatpush1.msra.mxu0 0.0
    %145 = vmatprep.subr.mxu0 0.0
    %146 = vmatpush1.msra.mxu0 0.0
    %147 = vmatprep.subr.mxu0 0.0
    %148 = vmatpush1.msra.mxu0 0.0
    %149 = vmatprep.subr.mxu0 0.0
    %150 = vmatpush1.msra.mxu0 0.0
    %151 = vmatprep.subr.mxu0 0.0
    %152 = vmatpush1.msra.mxu0 0.0
    %153 = vmatprep.subr.mxu0 0.0
    %154 = vmatpush1.msra.mxu0 0.0
    %155 = vmatprep.subr.mxu0 0.0
    %156 = vmatpush1.msra.mxu0 0.0
    %157 = vmatprep.subr.mxu0 0.0
    %158 = vmatpush1.msra.mxu0 0.0
    %159 = vmatprep.subr.mxu0 0.0
    %160 = vmatpush1.msra.mxu0 0.0
    %161 = vmatprep.subr.mxu0 0.0
    %162 = vmatpush1.msra.mxu0 0.0
    %163 = vmatprep.subr.mxu0 0.0
    %164 = vmatpush1.msra.mxu0 0.0
    %165 = vmatprep.mubr.f32.mxu0 0.0
    %166 = vmatmul.mubr.f32.gmra.mrb[0].mxu0 %v96
    %v167 = vpop.f32.mrb[0].mxu0
    %v168 = vadd.f32 %v92, %v167
    %v169 = vpop.f32.mrb[0].mxu0
    %170 = vmatprep.mubr.f32.mxu0 0.0
    %171 = vmatmul.mubr.f32.gmra.mrb[0].mxu0 %v99
    %v172 = vpop.f32.mrb[0].mxu0
    %v173 = vadd.f32 %v92, %v172
    %v174 = vpop.f32.mrb[0].mxu0
    %175 = vdwg.mxu0
    %v176 = vld [vmem:[#allocation8] sm:$0xff]
    %v177 = vld [vmem:[#allocation8 + $0x8] sm:$0xff]
    %v178 = vld [vmem:[#allocation8 + $0x10] sm:$0xff]
    %v179 = vld [vmem:[#allocation8 + $0x18] sm:$0xff]
    %v180 = vld [vmem:[%s5] sm:$0x1]
    %v182 = vlaneseq
    %v183 = vshrl.u32 %v182, 7
    %v184 = vsub.s32 0, %v183
    %v185 = vrot.slane %v180, %v184
    %v188 = vsel %vm94, %v81, 0
    %v191 = vsel %vm94, %v82, 0
    %193 = vmatprep.subr.mxu0 0.0
    %194 = vmatpush1.msra.mxu0 %v176
    %195 = vmatprep.subr.mxu0 0.0
    %196 = vmatpush1.msra.mxu0 %v177
    %197 = vmatprep.subr.mxu0 0.0
    %198 = vmatpush1.msra.mxu0 %v178
    %199 = vmatprep.subr.mxu0 0.0
    %200 = vmatpush1.msra.mxu0 %v179
    %201 = vmatprep.subr.mxu0 0.0
    %202 = vmatpush1.msra.mxu0 0.0
    %203 = vmatprep.subr.mxu0 0.0
    %204 = vmatpush1.msra.mxu0 0.0
    %205 = vmatprep.subr.mxu0 0.0
    %206 = vmatpush1.msra.mxu0 0.0
    %207 = vmatprep.subr.mxu0 0.0
    %208 = vmatpush1.msra.mxu0 0.0
    %209 = vmatprep.subr.mxu0 0.0
    %210 = vmatpush1.msra.mxu0 0.0
    %211 = vmatprep.subr.mxu0 0.0
    %212 = vmatpush1.msra.mxu0 0.0
    %213 = vmatprep.subr.mxu0 0.0
    %214 = vmatpush1.msra.mxu0 0.0
    %215 = vmatprep.subr.mxu0 0.0
    %216 = vmatpush1.msra.mxu0 0.0
    %217 = vmatprep.subr.mxu0 0.0
    %218 = vmatpush1.msra.mxu0 0.0
    %219 = vmatprep.subr.mxu0 0.0
    %220 = vmatpush1.msra.mxu0 0.0
    %221 = vmatprep.subr.mxu0 0.0
    %222 = vmatpush1.msra.mxu0 0.0
    %223 = vmatprep.subr.mxu0 0.0
    %224 = vmatpush1.msra.mxu0 0.0
    %225 = vmatprep.subr.mxu0 0.0
    %226 = vmatpush1.msra.mxu0 0.0
    %227 = vmatprep.subr.mxu0 0.0
    %228 = vmatpush1.msra.mxu0 0.0
    %229 = vmatprep.subr.mxu0 0.0
    %230 = vmatpush1.msra.mxu0 0.0
    %231 = vmatprep.subr.mxu0 0.0
    %232 = vmatpush1.msra.mxu0 0.0
    %233 = vmatprep.subr.mxu0 0.0
    %234 = vmatpush1.msra.mxu0 0.0
    %235 = vmatprep.subr.mxu0 0.0
    %236 = vmatpush1.msra.mxu0 0.0
    %237 = vmatprep.subr.mxu0 0.0
    %238 = vmatpush1.msra.mxu0 0.0
    %239 = vmatprep.subr.mxu0 0.0
    %240 = vmatpush1.msra.mxu0 0.0
    %241 = vmatprep.subr.mxu0 0.0
    %242 = vmatpush1.msra.mxu0 0.0
    %243 = vmatprep.subr.mxu0 0.0
    %244 = vmatpush1.msra.mxu0 0.0
    %245 = vmatprep.subr.mxu0 0.0
    %246 = vmatpush1.msra.mxu0 0.0
    %247 = vmatprep.subr.mxu0 0.0
    %248 = vmatpush1.msra.mxu0 0.0
    %249 = vmatprep.subr.mxu0 0.0
    %250 = vmatpush1.msra.mxu0 0.0
    %251 = vmatprep.subr.mxu0 0.0
    %252 = vmatpush1.msra.mxu0 0.0
    %253 = vmatprep.subr.mxu0 0.0
    %254 = vmatpush1.msra.mxu0 0.0
    %255 = vmatprep.subr.mxu0 0.0
    %256 = vmatpush1.msra.mxu0 0.0
    %257 = vmatprep.mubr.f32.mxu0 0.0
    %258 = vmatmul.mubr.f32.gmra.mrb[0].mxu0 %v188
    %v259 = vpop.f32.mrb[0].mxu0
    %v260 = vadd.f32 %v185, %v259
    %v261 = vpop.f32.mrb[0].mxu0
    %262 = vmatprep.mubr.f32.mxu0 0.0
    %263 = vmatmul.mubr.f32.gmra.mrb[0].mxu0 %v191
    %v264 = vpop.f32.mrb[0].mxu0
    %v265 = vadd.f32 %v185, %v264
    %v266 = vpop.f32.mrb[0].mxu0
    %267 = vdwg.mxu0
    %v269 = vsel %vm94, %v168, 0
    %v272 = vsel %vm94, %v260, 0
    %274 = vmatprep.subr.mxu0 0.0
    %275 = vmatpush1.xpose.msra.mxu0 %v272
    %276 = vmatprep.subr.mxu0 0.0
    %277 = vmatpush1.xpose.msra.mxu0 0.0
    %278 = vmatprep.subr.mxu0 0.0
    %279 = vmatpush1.xpose.msra.mxu0 0.0
    %280 = vmatprep.subr.mxu0 0.0
    %281 = vmatpush1.xpose.msra.mxu0 0.0
    %282 = vmatprep.subr.mxu0 0.0
    %283 = vmatpush1.xpose.msra.mxu0 0.0
    %284 = vmatprep.subr.mxu0 0.0
    %285 = vmatpush1.xpose.msra.mxu0 0.0
    %286 = vmatprep.subr.mxu0 0.0
    %287 = vmatpush1.xpose.msra.mxu0 0.0
    %288 = vmatprep.subr.mxu0 0.0
    %289 = vmatpush1.xpose.msra.mxu0 0.0
    %290 = vmatprep.subr.mxu0 0.0
    %291 = vmatpush1.xpose.msra.mxu0 0.0
    %292 = vmatprep.subr.mxu0 0.0
    %293 = vmatpush1.xpose.msra.mxu0 0.0
    %294 = vmatprep.subr.mxu0 0.0
    %295 = vmatpush1.xpose.msra.mxu0 0.0
    %296 = vmatprep.subr.mxu0 0.0
    %297 = vmatpush1.xpose.msra.mxu0 0.0
    %298 = vmatprep.subr.mxu0 0.0
    %299 = vmatpush1.xpose.msra.mxu0 0.0
    %300 = vmatprep.subr.mxu0 0.0
    %301 = vmatpush1.xpose.msra.mxu0 0.0
    %302 = vmatprep.subr.mxu0 0.0
    %303 = vmatpush1.xpose.msra.mxu0 0.0
    %304 = vmatprep.subr.mxu0 0.0
    %305 = vmatpush1.xpose.msra.mxu0 0.0
    %306 = vmatprep.subr.mxu0 0.0
    %307 = vmatpush1.xpose.msra.mxu0 0.0
    %308 = vmatprep.subr.mxu0 0.0
    %309 = vmatpush1.xpose.msra.mxu0 0.0
    %310 = vmatprep.subr.mxu0 0.0
    %311 = vmatpush1.xpose.msra.mxu0 0.0
    %312 = vmatprep.subr.mxu0 0.0
    %313 = vmatpush1.xpose.msra.mxu0 0.0
    %314 = vmatprep.subr.mxu0 0.0
    %315 = vmatpush1.xpose.msra.mxu0 0.0
    %316 = vmatprep.subr.mxu0 0.0
    %317 = vmatpush1.xpose.msra.mxu0 0.0
    %318 = vmatprep.subr.mxu0 0.0
    %319 = vmatpush1.xpose.msra.mxu0 0.0
    %320 = vmatprep.subr.mxu0 0.0
    %321 = vmatpush1.xpose.msra.mxu0 0.0
    %322 = vmatprep.subr.mxu0 0.0
    %323 = vmatpush1.xpose.msra.mxu0 0.0
    %324 = vmatprep.subr.mxu0 0.0
    %325 = vmatpush1.xpose.msra.mxu0 0.0
    %326 = vmatprep.subr.mxu0 0.0
    %327 = vmatpush1.xpose.msra.mxu0 0.0
    %328 = vmatprep.subr.mxu0 0.0
    %329 = vmatpush1.xpose.msra.mxu0 0.0
    %330 = vmatprep.subr.mxu0 0.0
    %331 = vmatpush1.xpose.msra.mxu0 0.0
    %332 = vmatprep.subr.mxu0 0.0
    %333 = vmatpush1.xpose.msra.mxu0 0.0
    %334 = vmatprep.subr.mxu0 0.0
    %335 = vmatpush1.xpose.msra.mxu0 0.0
    %336 = vmatprep.subr.mxu0 0.0
    %337 = vmatpush1.xpose.msra.mxu0 0.0
    %338 = vmatprep.mubr.f32.mxu0 0.0
    %339 = vmatmul.mubr.f32.gmra.mrb[0].mxu0 %v269
    %v340 = vpop.f32.mrb[0].mxu0
    %v341 = vadd.f32 0.0, %v340
    %v342 = vpop.f32.mrb[0].mxu0
    %343 = vdwg.mxu0
    %v345 = vsel %vm94, %v173, 0
    %v348 = vsel %vm94, %v265, 0
    %350 = vmatprep.subr.mxu0 0.0
    %351 = vmatpush1.xpose.msra.mxu0 %v348
    %352 = vmatprep.subr.mxu0 0.0
    %353 = vmatpush1.xpose.msra.mxu0 0.0
    %354 = vmatprep.subr.mxu0 0.0
    %355 = vmatpush1.xpose.msra.mxu0 0.0
    %356 = vmatprep.subr.mxu0 0.0
    %357 = vmatpush1.xpose.msra.mxu0 0.0
    %358 = vmatprep.subr.mxu0 0.0
    %359 = vmatpush1.xpose.msra.mxu0 0.0
    %360 = vmatprep.subr.mxu0 0.0
    %361 = vmatpush1.xpose.msra.mxu0 0.0
    %362 = vmatprep.subr.mxu0 0.0
    %363 = vmatpush1.xpose.msra.mxu0 0.0
    %364 = vmatprep.subr.mxu0 0.0
    %365 = vmatpush1.xpose.msra.mxu0 0.0
    %366 = vmatprep.subr.mxu0 0.0
    %367 = vmatpush1.xpose.msra.mxu0 0.0
    %368 = vmatprep.subr.mxu0 0.0
    %369 = vmatpush1.xpose.msra.mxu0 0.0
    %370 = vmatprep.subr.mxu0 0.0
    %371 = vmatpush1.xpose.msra.mxu0 0.0
    %372 = vmatprep.subr.mxu0 0.0
    %373 = vmatpush1.xpose.msra.mxu0 0.0
    %374 = vmatprep.subr.mxu0 0.0
    %375 = vmatpush1.xpose.msra.mxu0 0.0
    %376 = vmatprep.subr.mxu0 0.0
    %377 = vmatpush1.xpose.msra.mxu0 0.0
    %378 = vmatprep.subr.mxu0 0.0
    %379 = vmatpush1.xpose.msra.mxu0 0.0
    %380 = vmatprep.subr.mxu0 0.0
    %381 = vmatpush1.xpose.msra.mxu0 0.0
    %382 = vmatprep.subr.mxu0 0.0
    %383 = vmatpush1.xpose.msra.mxu0 0.0
    %384 = vmatprep.subr.mxu0 0.0
    %385 = vmatpush1.xpose.msra.mxu0 0.0
    %386 = vmatprep.subr.mxu0 0.0
    %387 = vmatpush1.xpose.msra.mxu0 0.0
    %388 = vmatprep.subr.mxu0 0.0
    %389 = vmatpush1.xpose.msra.mxu0 0.0
    %390 = vmatprep.subr.mxu0 0.0
    %391 = vmatpush1.xpose.msra.mxu0 0.0
    %392 = vmatprep.subr.mxu0 0.0
    %393 = vmatpush1.xpose.msra.mxu0 0.0
    %394 = vmatprep.subr.mxu0 0.0
    %395 = vmatpush1.xpose.msra.mxu0 0.0
    %396 = vmatprep.subr.mxu0 0.0
    %397 = vmatpush1.xpose.msra.mxu0 0.0
    %398 = vmatprep.subr.mxu0 0.0
    %399 = vmatpush1.xpose.msra.mxu0 0.0
    %400 = vmatprep.subr.mxu0 0.0
    %401 = vmatpush1.xpose.msra.mxu0 0.0
    %402 = vmatprep.subr.mxu0 0.0
    %403 = vmatpush1.xpose.msra.mxu0 0.0
    %404 = vmatprep.subr.mxu0 0.0
    %405 = vmatpush1.xpose.msra.mxu0 0.0
    %406 = vmatprep.subr.mxu0 0.0
    %407 = vmatpush1.xpose.msra.mxu0 0.0
    %408 = vmatprep.subr.mxu0 0.0
    %409 = vmatpush1.xpose.msra.mxu0 0.0
    %410 = vmatprep.subr.mxu0 0.0
    %411 = vmatpush1.xpose.msra.mxu0 0.0
    %412 = vmatprep.subr.mxu0 0.0
    %413 = vmatpush1.xpose.msra.mxu0 0.0
    %414 = vmatprep.mubr.f32.mxu0 0.0
    %415 = vmatmul.mubr.f32.gmra.mrb[0].mxu0 %v345
    %v416 = vpop.f32.mrb[0].mxu0
    %v417 = vadd.f32 0.0, %v416
    %v418 = vpop.f32.mrb[0].mxu0
    %419 = vdwg.mxu0
    %v420 = vmul.f32 %v341, 0.17677669
    %v421 = vmul.f32 %v417, 0.17677669
    %vm422 = vcmask 64512
    %v423 = vsel %vm422, %v420, -inf
    %424 = vmax.xlane.f32.xlu0 %v423
    %v425 = vpop.xlane.xlu0 %424
    %v426 = vsel %vm422, %v421, -inf
    %427 = vmax.xlane.f32.xlu0 %v426
    %v428 = vpop.xlane.xlu0 %427
    %v429 = vsub.f32 %v420, %v425
    %v430 = vsub.f32 %v421, %v428
    %v431 = vmul.f32 %v429, 1.442695
    %v432 = vpow.pop %v431
    %v433 = vmul.f32 %v430, 1.442695
    %v434 = vpow.pop %v433
    %v435 = vsel %vm422, %v432, 0.0
    %436 = vadd.xlane.f32.xlu0 %v435
    %v437 = vpop.xlane.xlu0 %436
    %v438 = vsel %vm422, %v434, 0.0
    %439 = vadd.xlane.f32.xlu0 %v438
    %v440 = vpop.xlane.xlu0 %439
    %v441 = vrcp.pop %v437
    %v442 = vrcp.pop %v440
    %v443 = vmul.f32 %v432, %v441
    %v444 = vmul.f32 %v434, %v442
    %445 = vrot.lane.b32.xlu0 %v260, 96
    %v446 = vpop.permute.xlu0 %445
    %v449 = vsel %vm422, %v443, 0
    %451 = vmatprep.subr.mxu0 0.0
    %452 = vmatpush1.msra.mxu0 %v446
    %453 = vmatprep.subr.mxu0 0.0
    %454 = vmatpush1.msra.mxu0 0.0
    %455 = vmatprep.subr.mxu0 0.0
    %456 = vmatpush1.msra.mxu0 0.0
    %457 = vmatprep.subr.mxu0 0.0
    %458 = vmatpush1.msra.mxu0 0.0
    %459 = vmatprep.subr.mxu0 0.0
    %460 = vmatpush1.msra.mxu0 0.0
    %461 = vmatprep.subr.mxu0 0.0
    %462 = vmatpush1.msra.mxu0 0.0
    %463 = vmatprep.subr.mxu0 0.0
    %464 = vmatpush1.msra.mxu0 0.0
    %465 = vmatprep.subr.mxu0 0.0
    %466 = vmatpush1.msra.mxu0 0.0
    %467 = vmatprep.subr.mxu0 0.0
    %468 = vmatpush1.msra.mxu0 0.0
    %469 = vmatprep.subr.mxu0 0.0
    %470 = vmatpush1.msra.mxu0 0.0
    %471 = vmatprep.subr.mxu0 0.0
    %472 = vmatpush1.msra.mxu0 0.0
    %473 = vmatprep.subr.mxu0 0.0
    %474 = vmatpush1.msra.mxu0 0.0
    %475 = vmatprep.subr.mxu0 0.0
    %476 = vmatpush1.msra.mxu0 0.0
    %477 = vmatprep.subr.mxu0 0.0
    %478 = vmatpush1.msra.mxu0 0.0
    %479 = vmatprep.subr.mxu0 0.0
    %480 = vmatpush1.msra.mxu0 0.0
    %481 = vmatprep.subr.mxu0 0.0
    %482 = vmatpush1.msra.mxu0 0.0
    %483 = vmatprep.subr.mxu0 0.0
    %484 = vmatpush1.msra.mxu0 0.0
    %485 = vmatprep.subr.mxu0 0.0
    %486 = vmatpush1.msra.mxu0 0.0
    %487 = vmatprep.subr.mxu0 0.0
    %488 = vmatpush1.msra.mxu0 0.0
    %489 = vmatprep.subr.mxu0 0.0
    %490 = vmatpush1.msra.mxu0 0.0
    %491 = vmatprep.subr.mxu0 0.0
    %492 = vmatpush1.msra.mxu0 0.0
    %493 = vmatprep.subr.mxu0 0.0
    %494 = vmatpush1.msra.mxu0 0.0
    %495 = vmatprep.subr.mxu0 0.0
    %496 = vmatpush1.msra.mxu0 0.0
    %497 = vmatprep.subr.mxu0 0.0
    %498 = vmatpush1.msra.mxu0 0.0
    %499 = vmatprep.subr.mxu0 0.0
    %500 = vmatpush1.msra.mxu0 0.0
    %501 = vmatprep.subr.mxu0 0.0
    %502 = vmatpush1.msra.mxu0 0.0
    %503 = vmatprep.subr.mxu0 0.0
    %504 = vmatpush1.msra.mxu0 0.0
    %505 = vmatprep.subr.mxu0 0.0
    %506 = vmatpush1.msra.mxu0 0.0
    %507 = vmatprep.subr.mxu0 0.0
    %508 = vmatpush1.msra.mxu0 0.0
    %509 = vmatprep.subr.mxu0 0.0
    %510 = vmatpush1.msra.mxu0 0.0
    %511 = vmatprep.subr.mxu0 0.0
    %512 = vmatpush1.msra.mxu0 0.0
    %513 = vmatprep.subr.mxu0 0.0
    %514 = vmatpush1.msra.mxu0 0.0
    %515 = vmatprep.mubr.f32.mxu0 0.0
    %516 = vmatmul.mubr.f32.gmra.mrb[0].mxu0 %v449
    %v517 = vpop.f32.mrb[0].mxu0
    %v518 = vadd.f32 0.0, %v517
    %v519 = vpop.f32.mrb[0].mxu0
    %520 = vdwg.mxu0
    %521 = vrot.lane.b32.xlu0 %v265, 96
    %v522 = vpop.permute.xlu0 %521
    %v525 = vsel %vm422, %v444, 0
    %527 = vmatprep.subr.mxu0 0.0
    %528 = vmatpush1.msra.mxu0 %v522
    %529 = vmatprep.subr.mxu0 0.0
    %530 = vmatpush1.msra.mxu0 0.0
    %531 = vmatprep.subr.mxu0 0.0
    %532 = vmatpush1.msra.mxu0 0.0
    %533 = vmatprep.subr.mxu0 0.0
    %534 = vmatpush1.msra.mxu0 0.0
    %535 = vmatprep.subr.mxu0 0.0
    %536 = vmatpush1.msra.mxu0 0.0
    %537 = vmatprep.subr.mxu0 0.0
    %538 = vmatpush1.msra.mxu0 0.0
    %539 = vmatprep.subr.mxu0 0.0
    %540 = vmatpush1.msra.mxu0 0.0
    %541 = vmatprep.subr.mxu0 0.0
    %542 = vmatpush1.msra.mxu0 0.0
    %543 = vmatprep.subr.mxu0 0.0
    %544 = vmatpush1.msra.mxu0 0.0
    %545 = vmatprep.subr.mxu0 0.0
    %546 = vmatpush1.msra.mxu0 0.0
    %547 = vmatprep.subr.mxu0 0.0
    %548 = vmatpush1.msra.mxu0 0.0
    %549 = vmatprep.subr.mxu0 0.0
    %550 = vmatpush1.msra.mxu0 0.0
    %551 = vmatprep.subr.mxu0 0.0
    %552 = vmatpush1.msra.mxu0 0.0
    %553 = vmatprep.subr.mxu0 0.0
    %554 = vmatpush1.msra.mxu0 0.0
    %555 = vmatprep.subr.mxu0 0.0
    %556 = vmatpush1.msra.mxu0 0.0
    %557 = vmatprep.subr.mxu0 0.0
    %558 = vmatpush1.msra.mxu0 0.0
    %559 = vmatprep.subr.mxu0 0.0
    %560 = vmatpush1.msra.mxu0 0.0
    %561 = vmatprep.subr.mxu0 0.0
    %562 = vmatpush1.msra.mxu0 0.0
    %563 = vmatprep.subr.mxu0 0.0
    %564 = vmatpush1.msra.mxu0 0.0
    %565 = vmatprep.subr.mxu0 0.0
    %566 = vmatpush1.msra.mxu0 0.0
    %567 = vmatprep.subr.mxu0 0.0
    %568 = vmatpush1.msra.mxu0 0.0
    %569 = vmatprep.subr.mxu0 0.0
    %570 = vmatpush1.msra.mxu0 0.0
    %571 = vmatprep.subr.mxu0 0.0
    %572 = vmatpush1.msra.mxu0 0.0
    %573 = vmatprep.subr.mxu0 0.0
    %574 = vmatpush1.msra.mxu0 0.0
    %575 = vmatprep.subr.mxu0 0.0
    %576 = vmatpush1.msra.mxu0 0.0
    %577 = vmatprep.subr.mxu0 0.0
    %578 = vmatpush1.msra.mxu0 0.0
    %579 = vmatprep.subr.mxu0 0.0
    %580 = vmatpush1.msra.mxu0 0.0
    %581 = vmatprep.subr.mxu0 0.0
    %582 = vmatpush1.msra.mxu0 0.0
    %583 = vmatprep.subr.mxu0 0.0
    %584 = vmatpush1.msra.mxu0 0.0
    %585 = vmatprep.subr.mxu0 0.0
    %586 = vmatpush1.msra.mxu0 0.0
    %587 = vmatprep.subr.mxu0 0.0
    %588 = vmatpush1.msra.mxu0 0.0
    %589 = vmatprep.subr.mxu0 0.0
    %590 = vmatpush1.msra.mxu0 0.0
    %591 = vmatprep.mubr.f32.mxu0 0.0
    %592 = vmatmul.mubr.f32.gmra.mrb[0].mxu0 %v525
    %v593 = vpop.f32.mrb[0].mxu0
    %v594 = vadd.f32 0.0, %v593
    %v595 = vpop.f32.mrb[0].mxu0
    %596 = vdwg.mxu0
    %597 = vst.msk [vmem:[#allocation10] sm:$0xff] %vm94, %v518
    %598 = vst.msk [vmem:[#allocation10 + $0x8] sm:$0xff] %vm94, %v594
    // Predicated region
    $region42: #{tpu_custom_call.1} parent=1 // pred_check
      _
    $region43: #{tpu_custom_call.1} parent=1 // pred_check_branch
      %600 = sbr.rel (0) target = $region45
    $region44: #{tpu_custom_call.1} parent=1 // pred_region
      %s602 = ssub.s32 256, 256
      %603 = vsyncadd [#allocation4], %s602
      %s604 = sshll.u32 [#allocation10], 4
      %s605 = int_to_ptr.vmem [resolvable:$true] %s604
      %610 = dma.vmem_to_hbm [thread:$0]  %s605, 256, %s6, [#allocation4], 128, 128, 8
    $region45: #{tpu_custom_call.1} parent=1 // pred_fallthru
      _
    // Predicated region
    $region46: #{tpu_custom_call.1} parent=1 // pred_check
      _
    $region47: #{tpu_custom_call.1} parent=1 // pred_check_branch
      %612 = sbr.rel (0) target = $region49
    $region48: #{tpu_custom_call.1} parent=1 // pred_region
      %613 = dma.done [#allocation4], 256
    $region49: #{tpu_custom_call.1} parent=1 // pred_fallthru
      _
    %614 = vsyncpa [#allocation3], 1
    %615 = vsyncpa [#allocation6], 1
    %616 = vsyncpa [#allocation9], 1
    %617 = vsyncpa [#allocation4], 1

</llo_original>
